<compile_context>
chip_gen: v7x
topology: tpu7x:2x2x1
jax: 0.10.0
libtpu: 0.0.40
codegen_flags: <defaults>
</compile_context>

<pallas_src>
import jax
import jax.numpy as jnp
from jax.experimental import pallas as pl
from jax.experimental.pallas import tpu as pltpu


def _make_coupler_kernel(C, chunk):
    """Kernel closure over static channel count C and lane chunk size."""

    def kernel(x_ref, w1t_ref, b1_ref, w2t_ref, b2_ref, shift_ref, logscale_ref):
        # x_ref:        (NB, C, TM)   pixels on the lane axis
        # w1t_ref:      (HID, C)
        # b1_ref:       (HID, 1)
        # w2t_ref:      (2C, HID)     rows [:C] = shift, rows [C:] = log-scale
        # b2_ref:       (2C, 1)
        # shift_ref / logscale_ref: (NB, C, TM)
        NB, _, TM = x_ref.shape
        num_chunks = TM // chunk

        # Weights / biases are tiny and resident; load them once per grid step.
        w1t = w1t_ref[...]
        b1 = b1_ref[...]
        w2t = w2t_ref[...]
        b2 = b2_ref[...]

        def process(b, start):
            if chunk == TM:
                xb = x_ref[b]                                    # (C, TM)
            else:
                xb = x_ref[b, :, pl.ds(start, chunk)]            # (C, chunk)
            h = jnp.dot(w1t, xb, preferred_element_type=jnp.float32) + b1
            h = jnp.maximum(h, 0.0)                              # (HID, chunk)
            y = jnp.dot(w2t, h, preferred_element_type=jnp.float32) + b2  # (2C, chunk)
            shift = y[:C].astype(shift_ref.dtype)
            logsc = y[C:].astype(logscale_ref.dtype)
            if chunk == TM:
                shift_ref[b] = shift
                logscale_ref[b] = logsc
            else:
                shift_ref[b, :, pl.ds(start, chunk)] = shift
                logscale_ref[b, :, pl.ds(start, chunk)] = logsc

        def per_batch(b):
            if num_chunks == 1:          # static: no inner loop needed
                process(b, 0)
            else:
                def per_chunk(c):
                    process(b, pl.multiple_of(c * chunk, 128))
                pl.loop(0, num_chunks)(per_chunk)

        if NB == 1:                      # static: no batch loop needed
            per_batch(0)
        else:
            pl.loop(0, NB)(per_batch)

    return kernel


def _pick_tiles(N, C, HW, itemsize, *, io_vmem_budget=8 << 20):
    """Choose (batch block, lane tile) so double-buffered in+out tiles fill the
    VMEM I/O budget (multi-MB per grid step) without exceeding it."""
    # Double-buffered in-tile + two out-tiles: 2 * 3 * NB * C * tile_m * itemsize
    max_lane_elems = max(1, io_vmem_budget // (2 * 3 * C * itemsize))  # cap on NB*tile_m

    # Largest multiple-of-128 divisor of HW under the cap; full HW is always legal.
    tile_m = None
    t = 128
    while t <= min(HW, max_lane_elems):
        if HW % t == 0:
            tile_m = t
        t += 128
    if tile_m is None:
        tile_m = HW

    # Largest batch block that keeps the double-buffered I/O under budget.
    nb = 1
    for d in range(1, N + 1):
        if N % d == 0 and d * tile_m <= max_lane_elems:
            nb = d

    # Keep >=2 grid steps (multi-TensorCore sharding on v7x) when the per-step
    # payload is already comfortably large; tiny problems stay as one step.
    payload = 3 * nb * C * tile_m * itemsize
    if (N // nb) * (HW // tile_m) == 1 and payload >= (2 << 20):
        if nb > 1:
            nb = max(d for d in range(1, nb) if N % d == 0)
        else:
            smaller = [s for s in range(128, tile_m, 128) if HW % s == 0]
            if smaller:
                tile_m = smaller[-1]
    return nb, tile_m


def _pick_chunk(tile_m, *, max_chunk=2048):
    """In-kernel lane chunk: bounds the h intermediate while DMA tiles grow."""
    best = None
    t = 128
    while t <= min(tile_m, max_chunk):
        if tile_m % t == 0:
            best = t
        t += 128
    return best if best is not None else tile_m


def shared_coupler_forward(x_nchw, w1, b1, w2, b2):
    """x_nchw: (N, C, H, W).  Returns {'shift', 'log-scale'}, each (N, C, H, W)."""
    N, C, H, W = x_nchw.shape
    HID = w1.shape[1]
    assert w1.shape == (C, HID)
    assert b1.shape == (HID,)
    assert w2.shape == (HID, 2 * C)
    assert b2.shape == (2 * C,)
    HW = H * W
    itemsize = jnp.dtype(x_nchw.dtype).itemsize

    nb, tile_m = _pick_tiles(N, C, HW, itemsize)
    chunk = _pick_chunk(tile_m)

    # Free reshape: NCHW -> (N, C, H*W); pixels land on the lane axis.
    x3 = x_nchw.reshape(N, C, HW)

    # Tiny one-time parameter reshuffles (outside the memory-bound loop).
    w1t = jnp.transpose(w1)              # (HID, C)
    b1c = b1.reshape(HID, 1)             # (HID, 1)
    w2t = jnp.transpose(w2)              # (2C, HID): rows [:C]=shift, [C:]=log-scale
    b2c = b2.reshape(2 * C, 1)           # (2C, 1)

    grid = (N // nb, HW // tile_m)
    kernel = _make_coupler_kernel(C, chunk)

    shift3, logscale3 = pl.pallas_call(
        kernel,
        out_shape=(
            jax.ShapeDtypeStruct((N, C, HW), x_nchw.dtype),
            jax.ShapeDtypeStruct((N, C, HW), x_nchw.dtype),
        ),
        grid_spec=pltpu.PrefetchScalarGridSpec(
            num_scalar_prefetch=0,
            grid=grid,
            in_specs=[
                pl.BlockSpec((nb, C, tile_m), lambda n, j: (n, 0, j)),  # x tile
                pl.BlockSpec((HID, C), lambda n, j: (0, 0)),            # w1^T (resident)
                pl.BlockSpec((HID, 1), lambda n, j: (0, 0)),            # b1
                pl.BlockSpec((2 * C, HID), lambda n, j: (0, 0)),        # w2^T (fused halves)
                pl.BlockSpec((2 * C, 1), lambda n, j: (0, 0)),          # b2
            ],
            out_specs=[
                pl.BlockSpec((nb, C, tile_m), lambda n, j: (n, 0, j)),
                pl.BlockSpec((nb, C, tile_m), lambda n, j: (n, 0, j)),
            ],
        ),
        compiler_params=pltpu.CompilerParams(
            dimension_semantics=("parallel", "parallel"),
            vmem_limit_bytes=32 * 1024 * 1024,
        ),
    )(x3, w1t, b1c, w2t, b2c)

    # Free reshape back to NCHW — no transpose passes.
    return {
        "shift": shift3.reshape(N, C, H, W),
        "log-scale": logscale3.reshape(N, C, H, W),
    }


def _reference(x_nchw, w1, b1, w2, b2):
    N, C, H, W = x_nchw.shape
    x = jnp.transpose(x_nchw, (0, 2, 3, 1)).reshape(-1, C)
    h = jnp.maximum(x @ w1 + b1, 0.0)
    y = h @ w2 + b2
    shift, log_scale = y[:, :C], y[:, C:]
    f = lambda z: jnp.transpose(z.reshape(N, H, W, C), (0, 3, 1, 2))
    return {"shift": f(shift), "log-scale": f(log_scale)}


if __name__ == "__main__":
    # TODO(synk): jvp()/pack_jvp path of SharedCoupler is training-time-only and not implemented here.
    N, C, H, W = 2, 4, 16, 16
    HID = 32

    key = jax.random.PRNGKey(0)
    kx, k1, k2, k3, k4 = jax.random.split(key, 5)

    x = jax.random.normal(kx, (N, C, H, W), dtype=jnp.float32)
    # Deterministic synthetic parameters for the shift_log_scale_net
    # (1x1 convs expressed as channel matmuls).
    w1 = jax.random.normal(k1, (C, HID), dtype=jnp.float32) * 0.1
    b1 = jax.random.normal(k2, (HID,), dtype=jnp.float32) * 0.01
    w2 = jax.random.normal(k3, (HID, 2 * C), dtype=jnp.float32) * 0.1
    b2 = jax.random.normal(k4, (2 * C,), dtype=jnp.float32) * 0.01

    out = shared_coupler_forward(x, w1, b1, w2, b2)
    jax.block_until_ready(out)

    ref = _reference(x, w1, b1, w2, b2)
    assert out["shift"].shape == (N, C, H, W)
    assert out["log-scale"].shape == (N, C, H, W)
    assert jnp.allclose(out["shift"], ref["shift"], atol=1e-5)
    assert jnp.allclose(out["log-scale"], ref["log-scale"], atol=1e-5)

    print("KERNEL_OK")
</pallas_src>

<mosaic_0001>
module attributes {stable_mosaic.version = 11 : i64} {
  func.func @kernel(%arg0: i32, %arg1: i32, %arg2: memref<2x4x256xf32, #tpu.memory_space<vmem>>, %arg3: memref<32x4xf32, #tpu.memory_space<vmem>>, %arg4: memref<32x1xf32, #tpu.memory_space<vmem>>, %arg5: memref<8x32xf32, #tpu.memory_space<vmem>>, %arg6: memref<8x1xf32, #tpu.memory_space<vmem>>, %arg7: memref<2x4x256xf32, #tpu.memory_space<vmem>>, %arg8: memref<2x4x256xf32, #tpu.memory_space<vmem>>) attributes {dimension_semantics = [#tpu.dimension_semantics<parallel>, #tpu.dimension_semantics<parallel>], iteration_bounds = array<i64: 1, 1>, scalar_prefetch = 0 : i64, scratch_operands = 0 : i64, tpu.core_type = #tpu.core_type<tc>, window_params = [{transform_indices = @transform_0, window_bounds = array<i64: 2, 4, 256>}, {pipeline_mode = #tpu.pipeline_mode<synchronous>, transform_indices = @transform_1, window_bounds = array<i64: 32, 4>}, {pipeline_mode = #tpu.pipeline_mode<synchronous>, transform_indices = @transform_2, window_bounds = array<i64: 32, 1>}, {pipeline_mode = #tpu.pipeline_mode<synchronous>, transform_indices = @transform_3, window_bounds = array<i64: 8, 32>}, {pipeline_mode = #tpu.pipeline_mode<synchronous>, transform_indices = @transform_4, window_bounds = array<i64: 8, 1>}, {transform_indices = @transform_5, window_bounds = array<i64: 2, 4, 256>}, {transform_indices = @transform_6, window_bounds = array<i64: 2, 4, 256>}]} {
    %c0 = arith.constant 0 : index
    %c0_0 = arith.constant 0 : index
    %0 = vector.load %arg3[%c0, %c0_0] : memref<32x4xf32, #tpu.memory_space<vmem>>, vector<32x4xf32>
    %c0_1 = arith.constant 0 : index
    %c0_2 = arith.constant 0 : index
    %1 = vector.load %arg4[%c0_1, %c0_2] : memref<32x1xf32, #tpu.memory_space<vmem>>, vector<32x1xf32>
    %c0_3 = arith.constant 0 : index
    %c0_4 = arith.constant 0 : index
    %2 = vector.load %arg5[%c0_3, %c0_4] : memref<8x32xf32, #tpu.memory_space<vmem>>, vector<8x32xf32>
    %c0_5 = arith.constant 0 : index
    %c0_6 = arith.constant 0 : index
    %3 = vector.load %arg6[%c0_5, %c0_6] : memref<8x1xf32, #tpu.memory_space<vmem>>, vector<8x1xf32>
    %c0_i32 = arith.constant 0 : i32
    %c2_i32 = arith.constant 2 : i32
    %4 = arith.addi %c0_i32, %c2_i32 : i32
    %c1_i32 = arith.constant 1 : i32
    scf.for %arg9 = %c0_i32 to %4 step %c1_i32  : i32 {
      %c1_i32_8 = arith.constant 1 : i32
      %5 = arith.muli %arg9, %c1_i32_8 : i32
      %c0_i32_9 = arith.constant 0 : i32
      %6 = arith.addi %c0_i32_9, %5 : i32
      %7 = arith.index_cast %6 : i32 to index
      %c0_10 = arith.constant 0 : index
      %c0_11 = arith.constant 0 : index
      %8 = vector.load %arg2[%7, %c0_10, %c0_11] : memref<2x4x256xf32, #tpu.memory_space<vmem>>, vector<1x4x256xf32>
      %9 = vector.shape_cast %8 : vector<1x4x256xf32> to vector<4x256xf32>
      %cst = arith.constant dense<0.000000e+00> : vector<32x256xf32>
      %10 = tpu.matmul %0, %9, %cst {dimension_numbers = #tpu.dot_dimension_numbers<[1], [0], [0], [1], [0, 0, 1, 1], [], []>} : vector<32x4xf32>, vector<4x256xf32>, vector<32x256xf32> -> vector<32x256xf32>
      %11 = vector.broadcast %1 : vector<32x1xf32> to vector<32x256xf32>
      %12 = arith.addf %10, %11 : vector<32x256xf32>
      %cst_12 = arith.constant 0.000000e+00 : f32
      %13 = vector.broadcast %cst_12 : f32 to vector<32x256xf32>
      %14 = arith.maximumf %12, %13 : vector<32x256xf32>
      %cst_13 = arith.constant dense<0.000000e+00> : vector<8x256xf32>
      %15 = tpu.matmul %2, %14, %cst_13 {dimension_numbers = #tpu.dot_dimension_numbers<[1], [0], [0], [1], [0, 0, 1, 1], [], []>} : vector<8x32xf32>, vector<32x256xf32>, vector<8x256xf32> -> vector<8x256xf32>
      %16 = vector.broadcast %3 : vector<8x1xf32> to vector<8x256xf32>
      %17 = arith.addf %15, %16 : vector<8x256xf32>
      %18 = vector.extract_strided_slice %17 {offsets = [0, 0], sizes = [4, 256], strides = [1, 1]} : vector<8x256xf32> to vector<4x256xf32>
      %19 = vector.extract_strided_slice %17 {offsets = [4, 0], sizes = [4, 256], strides = [1, 1]} : vector<8x256xf32> to vector<4x256xf32>
      %20 = arith.index_cast %6 : i32 to index
      %c0_14 = arith.constant 0 : index
      %c0_15 = arith.constant 0 : index
      %21 = vector.load %arg7[%20, %c0_14, %c0_15] : memref<2x4x256xf32, #tpu.memory_space<vmem>>, vector<1x4x256xf32>
      %22 = vector.shape_cast %21 : vector<1x4x256xf32> to vector<4x256xf32>
      %23 = vector.shape_cast %18 : vector<4x256xf32> to vector<1x4x256xf32>
      tpu.vector_store %arg7[%20, %c0_14, %c0_15], %23 {strides = array<i32>} : memref<2x4x256xf32, #tpu.memory_space<vmem>>, vector<1x4x256xf32>,
      %24 = arith.index_cast %6 : i32 to index
      %c0_16 = arith.constant 0 : index
      %c0_17 = arith.constant 0 : index
      %25 = vector.load %arg8[%24, %c0_16, %c0_17] : memref<2x4x256xf32, #tpu.memory_space<vmem>>, vector<1x4x256xf32>
      %26 = vector.shape_cast %25 : vector<1x4x256xf32> to vector<4x256xf32>
      %27 = vector.shape_cast %19 : vector<4x256xf32> to vector<1x4x256xf32>
      tpu.vector_store %arg8[%24, %c0_16, %c0_17], %27 {strides = array<i32>} : memref<2x4x256xf32, #tpu.memory_space<vmem>>, vector<1x4x256xf32>,
    }
    %c2_i32_7 = arith.constant 2 : i32
    return
  }
  func.func @transform_0(%arg0: i32, %arg1: i32) -> (i32, i32, i32) {
    %c0_i32 = arith.constant 0 : i32
    %c0_i32_0 = arith.constant 0 : i32
    return %arg0, %c0_i32, %arg1 : i32, i32, i32
  }
  func.func @transform_1(%arg0: i32, %arg1: i32) -> (i32, i32) {
    %c0_i32 = arith.constant 0 : i32
    %c0_i32_0 = arith.constant 0 : i32
    %c0_i32_1 = arith.constant 0 : i32
    return %c0_i32, %c0_i32_0 : i32, i32
  }
  func.func @transform_2(%arg0: i32, %arg1: i32) -> (i32, i32) {
    %c0_i32 = arith.constant 0 : i32
    %c0_i32_0 = arith.constant 0 : i32
    %c0_i32_1 = arith.constant 0 : i32
    return %c0_i32, %c0_i32_0 : i32, i32
  }
  func.func @transform_3(%arg0: i32, %arg1: i32) -> (i32, i32) {
    %c0_i32 = arith.constant 0 : i32
    %c0_i32_0 = arith.constant 0 : i32
    %c0_i32_1 = arith.constant 0 : i32
    return %c0_i32, %c0_i32_0 : i32, i32
  }
  func.func @transform_4(%arg0: i32, %arg1: i32) -> (i32, i32) {
    %c0_i32 = arith.constant 0 : i32
    %c0_i32_0 = arith.constant 0 : i32
    %c0_i32_1 = arith.constant 0 : i32
    return %c0_i32, %c0_i32_0 : i32, i32
  }
  func.func @transform_5(%arg0: i32, %arg1: i32) -> (i32, i32, i32) {
    %c0_i32 = arith.constant 0 : i32
    %c0_i32_0 = arith.constant 0 : i32
    return %arg0, %c0_i32, %arg1 : i32, i32, i32
  }
  func.func @transform_6(%arg0: i32, %arg1: i32) -> (i32, i32, i32) {
    %c0_i32 = arith.constant 0 : i32
    %c0_i32_0 = arith.constant 0 : i32
    return %arg0, %c0_i32, %arg1 : i32, i32, i32
  }
}

</mosaic_0001>

<llo_original>
// kernel: tpu_custom_call.1
$region0: #{tpu_custom_call.1}
  #allocation0 [shape = 'u32[]', space=smem, size = 0x4, offset = 0x4, fixed_abs, tag = 'smem constant byte address 0x4 - core index']
  #allocation1 [shape = 'u32[144,128]{1,0:T(1,128)}', space=vmem, size = 0x12000, scoped, tag = 'internal scratch']
  %s0 = inlined_call_operand.vmem [shape: f32[2,4,256], index: 0, kind: input, shape index: {}]
  %s1 = inlined_call_operand.vmem [shape: f32[32,4], index: 1, kind: input, shape index: {}]
  %s2 = inlined_call_operand.vmem [shape: f32[32,1], index: 2, kind: input, shape index: {}]
  %s3 = inlined_call_operand.vmem [shape: f32[8,32], index: 3, kind: input, shape index: {}]
  %s4 = inlined_call_operand.vmem [shape: f32[8,1], index: 4, kind: input, shape index: {}]
  %s5 = inlined_call_operand.hbm [shape: f32[2,4,256], index: 5, kind: output, shape index: {0}]
  %s6 = inlined_call_operand.hbm [shape: f32[2,4,256], index: 6, kind: output, shape index: {1}]
  %7 = xla_tuple %s5, %s6
  %s8 = sld [smem:[#allocation0]]
  $region45: #{tpu_custom_call.1} parent=0
    _
  %s10 = ssub.s32 1, %s8
  %s11 = scalar_select 0, %s10, %s8
  $region1: #{tpu_custom_call.1} parent=0
    #allocation2 [shape = 'u8[8192]{0}', space=vmem, size = 0x2000, scoped, tag = 'output window, operand 0, single buffered']
    #allocation3 [shape = 's32[1]{0}', space=sflag, size = 0x4, scoped, tag = 'scoped memory for tpu_custom_call.1']
    #allocation4 [shape = 'u8[8192]{0}', space=vmem, size = 0x2000, scoped, tag = 'output window, operand 1, single buffered']
    #allocation5 [shape = 's32[1]{0}', space=sflag, size = 0x4, scoped, tag = 'scoped memory for tpu_custom_call.1']
    %12 = vsyncpa [#allocation3], 0
    %13 = vsyncpa [#allocation5], 0
    // Predicated region
    $region2: #{tpu_custom_call.1} parent=1 // pred_check
      _
    $region3: #{tpu_custom_call.1} parent=1 // pred_check_branch
      %15 = sbr.rel (0) target = $region5
    $region4: #{tpu_custom_call.1} parent=1 // pred_region
      _
    $region5: #{tpu_custom_call.1} parent=1 // pred_fallthru
      _
    // Predicated region
    $region6: #{tpu_custom_call.1} parent=1 // pred_check
      _
    $region7: #{tpu_custom_call.1} parent=1 // pred_check_branch
      %17 = sbr.rel (0) target = $region9
    $region8: #{tpu_custom_call.1} parent=1 // pred_region
      _
    $region9: #{tpu_custom_call.1} parent=1 // pred_fallthru
      _
    // Predicated region
    $region10: #{tpu_custom_call.1} parent=1 // pred_check
      _
    $region11: #{tpu_custom_call.1} parent=1 // pred_check_branch
      %19 = sbr.rel (0) target = $region13
    $region12: #{tpu_custom_call.1} parent=1 // pred_region
      _
    $region13: #{tpu_custom_call.1} parent=1 // pred_fallthru
      _
    // Predicated region
    $region14: #{tpu_custom_call.1} parent=1 // pred_check
      _
    $region15: #{tpu_custom_call.1} parent=1 // pred_check_branch
      %21 = sbr.rel (0) target = $region17
    $region16: #{tpu_custom_call.1} parent=1 // pred_region
      _
    $region17: #{tpu_custom_call.1} parent=1 // pred_fallthru
      _
    // Predicated region
    $region18: #{tpu_custom_call.1} parent=1 // pred_check
      _
    $region19: #{tpu_custom_call.1} parent=1 // pred_check_branch
      %23 = sbr.rel (0) target = $region21
    $region20: #{tpu_custom_call.1} parent=1 // pred_region
      _
    $region21: #{tpu_custom_call.1} parent=1 // pred_fallthru
      _
    %v24 = vld [vmem:[%s1] sm:$0xff]
    %v25 = vld [vmem:[%s1 + $0x8] sm:$0xff]
    %v26 = vld [vmem:[%s1 + $0x10] sm:$0xff]
    %v27 = vld [vmem:[%s1 + $0x18] sm:$0xff]
    %v28 = vld [vmem:[%s2] sm:$0xff]
    %v29 = vld [vmem:[%s2 + $0x8] sm:$0xff]
    %v30 = vld [vmem:[%s2 + $0x10] sm:$0xff]
    %v31 = vld [vmem:[%s2 + $0x18] sm:$0xff]
    %v32 = vld [vmem:[%s3] sm:$0xff]
    %v33 = vld [vmem:[%s4] sm:$0xff]
    loop: start=0, step=1, limit=2
    $region22: #{tpu_custom_call.1} parent=1 // loop_pre_header
      _
    $region23: #{tpu_custom_call.1} parent=1 // loop_header
      %s35 = sphi 0, %s39
      %p36 = scmp.ge.s32.totalorder %s35, 2
    $region24: #{tpu_custom_call.1} parent=1 // loop_header_branch
      %38 = sbr.rel (%p36) target = $region28
    $region25: #{tpu_custom_call.1} parent=1 // loop_body
      %s40 = smul.u32 %s35, 2
      %s41 = smul.addr %s40, 4
      %s42 = scalar_lea.vmem %s0, %s41
      %v43 = vld [vmem:[%s42] sm:$0xff]
      %45 = vset.pattern.permute.xlu0 0
      %46 = vperm.xlu0 %45, %v28
      %v47 = vpop.permute.xlu0 %46
      %50 = vset.pattern.permute.xlu0 0
      %51 = vperm.xlu0 %50, %v29
      %v52 = vpop.permute.xlu0 %51
      %55 = vset.pattern.permute.xlu0 0
      %56 = vperm.xlu0 %55, %v30
      %v57 = vpop.permute.xlu0 %56
      %60 = vset.pattern.permute.xlu0 0
      %61 = vperm.xlu0 %60, %v31
      %v62 = vpop.permute.xlu0 %61
      %v65 = vcombine.high %v43, %v43
      %vm66 = vcmask 31744
      %v68 = vsel %vm66, %v24, 0
      %v71 = vsel %vm66, %v25, 0
      %v74 = vsel %vm66, %v26, 0
      %v77 = vsel %vm66, %v27, 0
      %vm79 = vcmask 1043456
      %v80 = vsel %vm79, %v43, 0
      %v82 = vsel %vm79, %v65, 0
      %84 = vmatprep.subr.mxu0 %v82
      %85 = vmatpush1.msra.mxu0 %v80
      %86 = vmatprep.subr.mxu0 0.0
      %87 = vmatpush1.msra.mxu0 0.0
      %88 = vmatprep.subr.mxu0 0.0
      %89 = vmatpush1.msra.mxu0 0.0
      %90 = vmatprep.subr.mxu0 0.0
      %91 = vmatpush1.msra.mxu0 0.0
      %92 = vmatprep.subr.mxu0 0.0
      %93 = vmatpush1.msra.mxu0 0.0
      %94 = vmatprep.subr.mxu0 0.0
      %95 = vmatpush1.msra.mxu0 0.0
      %96 = vmatprep.subr.mxu0 0.0
      %97 = vmatpush1.msra.mxu0 0.0
      %98 = vmatprep.subr.mxu0 0.0
      %99 = vmatpush1.msra.mxu0 0.0
      %100 = vmatprep.subr.mxu0 0.0
      %101 = vmatpush1.msra.mxu0 0.0
      %102 = vmatprep.subr.mxu0 0.0
      %103 = vmatpush1.msra.mxu0 0.0
      %104 = vmatprep.subr.mxu0 0.0
      %105 = vmatpush1.msra.mxu0 0.0
      %106 = vmatprep.subr.mxu0 0.0
      %107 = vmatpush1.msra.mxu0 0.0
      %108 = vmatprep.subr.mxu0 0.0
      %109 = vmatpush1.msra.mxu0 0.0
      %110 = vmatprep.subr.mxu0 0.0
      %111 = vmatpush1.msra.mxu0 0.0
      %112 = vmatprep.subr.mxu0 0.0
      %113 = vmatpush1.msra.mxu0 0.0
      %114 = vmatprep.subr.mxu0 0.0
      %115 = vmatpush1.msra.mxu0 0.0
      %116 = vmatprep.subr.mxu0 0.0
      %117 = vmatpush1.msra.mxu0 0.0
      %118 = vmatprep.subr.mxu0 0.0
      %119 = vmatpush1.msra.mxu0 0.0
      %120 = vmatprep.subr.mxu0 0.0
      %121 = vmatpush1.msra.mxu0 0.0
      %122 = vmatprep.subr.mxu0 0.0
      %123 = vmatpush1.msra.mxu0 0.0
      %124 = vmatprep.subr.mxu0 0.0
      %125 = vmatpush1.msra.mxu0 0.0
      %126 = vmatprep.subr.mxu0 0.0
      %127 = vmatpush1.msra.mxu0 0.0
      %128 = vmatprep.subr.mxu0 0.0
      %129 = vmatpush1.msra.mxu0 0.0
      %130 = vmatprep.subr.mxu0 0.0
      %131 = vmatpush1.msra.mxu0 0.0
      %132 = vmatprep.subr.mxu0 0.0
      %133 = vmatpush1.msra.mxu0 0.0
      %134 = vmatprep.subr.mxu0 0.0
      %135 = vmatpush1.msra.mxu0 0.0
      %136 = vmatprep.subr.mxu0 0.0
      %137 = vmatpush1.msra.mxu0 0.0
      %138 = vmatprep.subr.mxu0 0.0
      %139 = vmatpush1.msra.mxu0 0.0
      %140 = vmatprep.subr.mxu0 0.0
      %141 = vmatpush1.msra.mxu0 0.0
      %142 = vmatprep.subr.mxu0 0.0
      %143 = vmatpush1.msra.mxu0 0.0
      %144 = vmatprep.subr.mxu0 0.0
      %145 = vmatpush1.msra.mxu0 0.0
      %146 = vmatprep.subr.mxu0 0.0
      %147 = vmatpush1.msra.mxu0 0.0
      %148 = vmatprep.mubr.f32.mxu0 0.0
      %149 = vmatmul.mubr.f32.gmra.mrb[0].mxu0 %v68
      %v150 = vpop.f32.mrb[0].mxu0
      %v151 = vadd.f32 %v47, %v150
      %v152 = vpop.f32.mrb[0].mxu0
      %v153 = vadd.f32 %v47, %v152
      %154 = vmatprep.mubr.f32.mxu0 0.0
      %155 = vmatmul.mubr.f32.gmra.mrb[0].mxu0 %v71
      %v156 = vpop.f32.mrb[0].mxu0
      %v157 = vadd.f32 %v52, %v156
      %v158 = vpop.f32.mrb[0].mxu0
      %v159 = vadd.f32 %v52, %v158
      %160 = vmatprep.mubr.f32.mxu0 0.0
      %161 = vmatmul.mubr.f32.gmra.mrb[0].mxu0 %v74
      %v162 = vpop.f32.mrb[0].mxu0
      %v163 = vadd.f32 %v57, %v162
      %v164 = vpop.f32.mrb[0].mxu0
      %v165 = vadd.f32 %v57, %v164
      %166 = vmatprep.mubr.f32.mxu0 0.0
      %167 = vmatmul.mubr.f32.gmra.mrb[0].mxu0 %v77
      %v168 = vpop.f32.mrb[0].mxu0
      %v169 = vadd.f32 %v62, %v168
      %v170 = vpop.f32.mrb[0].mxu0
      %v171 = vadd.f32 %v62, %v170
      %172 = vdwg.mxu0
      %v173 = vmax.f32 %v151, 0.0
      %v174 = vmax.f32 %v153, 0.0
      %v175 = vmax.f32 %v157, 0.0
      %v176 = vmax.f32 %v159, 0.0
      %v177 = vmax.f32 %v163, 0.0
      %v178 = vmax.f32 %v165, 0.0
      %v179 = vmax.f32 %v169, 0.0
      %v180 = vmax.f32 %v171, 0.0
      %182 = vset.pattern.permute.xlu0 0
      %183 = vperm.xlu0 %182, %v33
      %v184 = vpop.permute.xlu0 %183
      %vm186 = vcmask 261120
      %v188 = vsel %vm186, %v32, 0
      %190 = vmatprep.subr.mxu0 %v174
      %191 = vmatpush1.msra.mxu0 %v173
      %192 = vmatprep.subr.mxu0 %v176
      %193 = vmatpush1.msra.mxu0 %v175
      %194 = vmatprep.subr.mxu0 %v178
      %195 = vmatpush1.msra.mxu0 %v177
      %196 = vmatprep.subr.mxu0 %v180
      %197 = vmatpush1.msra.mxu0 %v179
      %198 = vmatprep.subr.mxu0 0.0
      %199 = vmatpush1.msra.mxu0 0.0
      %200 = vmatprep.subr.mxu0 0.0
      %201 = vmatpush1.msra.mxu0 0.0
      %202 = vmatprep.subr.mxu0 0.0
      %203 = vmatpush1.msra.mxu0 0.0
      %204 = vmatprep.subr.mxu0 0.0
      %205 = vmatpush1.msra.mxu0 0.0
      %206 = vmatprep.subr.mxu0 0.0
      %207 = vmatpush1.msra.mxu0 0.0
      %208 = vmatprep.subr.mxu0 0.0
      %209 = vmatpush1.msra.mxu0 0.0
      %210 = vmatprep.subr.mxu0 0.0
      %211 = vmatpush1.msra.mxu0 0.0
      %212 = vmatprep.subr.mxu0 0.0
      %213 = vmatpush1.msra.mxu0 0.0
      %214 = vmatprep.subr.mxu0 0.0
      %215 = vmatpush1.msra.mxu0 0.0
      %216 = vmatprep.subr.mxu0 0.0
      %217 = vmatpush1.msra.mxu0 0.0
      %218 = vmatprep.subr.mxu0 0.0
      %219 = vmatpush1.msra.mxu0 0.0
      %220 = vmatprep.subr.mxu0 0.0
      %221 = vmatpush1.msra.mxu0 0.0
      %222 = vmatprep.subr.mxu0 0.0
      %223 = vmatpush1.msra.mxu0 0.0
      %224 = vmatprep.subr.mxu0 0.0
      %225 = vmatpush1.msra.mxu0 0.0
      %226 = vmatprep.subr.mxu0 0.0
      %227 = vmatpush1.msra.mxu0 0.0
      %228 = vmatprep.subr.mxu0 0.0
      %229 = vmatpush1.msra.mxu0 0.0
      %230 = vmatprep.subr.mxu0 0.0
      %231 = vmatpush1.msra.mxu0 0.0
      %232 = vmatprep.subr.mxu0 0.0
      %233 = vmatpush1.msra.mxu0 0.0
      %234 = vmatprep.subr.mxu0 0.0
      %235 = vmatpush1.msra.mxu0 0.0
      %236 = vmatprep.subr.mxu0 0.0
      %237 = vmatpush1.msra.mxu0 0.0
      %238 = vmatprep.subr.mxu0 0.0
      %239 = vmatpush1.msra.mxu0 0.0
      %240 = vmatprep.subr.mxu0 0.0
      %241 = vmatpush1.msra.mxu0 0.0
      %242 = vmatprep.subr.mxu0 0.0
      %243 = vmatpush1.msra.mxu0 0.0
      %244 = vmatprep.subr.mxu0 0.0
      %245 = vmatpush1.msra.mxu0 0.0
      %246 = vmatprep.subr.mxu0 0.0
      %247 = vmatpush1.msra.mxu0 0.0
      %248 = vmatprep.subr.mxu0 0.0
      %249 = vmatpush1.msra.mxu0 0.0
      %250 = vmatprep.subr.mxu0 0.0
      %251 = vmatpush1.msra.mxu0 0.0
      %252 = vmatprep.subr.mxu0 0.0
      %253 = vmatpush1.msra.mxu0 0.0
      %254 = vmatprep.mubr.f32.mxu0 0.0
      %255 = vmatmul.mubr.f32.gmra.mrb[0].mxu0 %v188
      %v256 = vpop.f32.mrb[0].mxu0
      %v257 = vadd.f32 %v184, %v256
      %v258 = vpop.f32.mrb[0].mxu0
      %v259 = vadd.f32 %v184, %v258
      %260 = vdwg.mxu0
      %v263 = vcombine.low %v257, %v259
      %s265 = smul.addr %s40, 4
      %s266 = scalar_lea.vmem [#allocation2], %s265
      %267 = vst [vmem:[%s266] sm:$0xff] %v263
      %v268 = vcombine.high %v257, %v259
      %s270 = smul.addr %s40, 4
      %s271 = scalar_lea.vmem [#allocation4], %s270
      %272 = vst [vmem:[%s271] sm:$0xff] %v268
    $region26: #{tpu_custom_call.1} parent=1 // loop_footer
      %s39 = sadd.s32 1, %s35
    $region27: #{tpu_custom_call.1} parent=1 // loop_footer_branch
      %34 = sbr.rel target = $region23
    $region28: #{tpu_custom_call.1} parent=1 // loop_exit
      _
    // Predicated region
    $region29: #{tpu_custom_call.1} parent=1 // pred_check
      _
    $region30: #{tpu_custom_call.1} parent=1 // pred_check_branch
      %274 = sbr.rel (0) target = $region32
    $region31: #{tpu_custom_call.1} parent=1 // pred_region
      %s276 = ssub.s32 256, 256
      %277 = vsyncadd [#allocation3], %s276
      %s278 = sshll.u32 [#allocation2], 4
      %s279 = int_to_ptr.vmem [resolvable:$true] %s278
      %284 = dma.vmem_to_hbm [thread:$0]  %s279, 256, %s5, [#allocation3], 128, 128, 8
    $region32: #{tpu_custom_call.1} parent=1 // pred_fallthru
      _
    // Predicated region
    $region33: #{tpu_custom_call.1} parent=1 // pred_check
      _
    $region34: #{tpu_custom_call.1} parent=1 // pred_check_branch
      %286 = sbr.rel (0) target = $region36
    $region35: #{tpu_custom_call.1} parent=1 // pred_region
      %s288 = ssub.s32 256, 256
      %289 = vsyncadd [#allocation5], %s288
      %s290 = sshll.u32 [#allocation4], 4
      %s291 = int_to_ptr.vmem [resolvable:$true] %s290
      %296 = dma.vmem_to_hbm [thread:$0]  %s291, 256, %s6, [#allocation5], 128, 128, 8
    $region36: #{tpu_custom_call.1} parent=1 // pred_fallthru
      _
    // Predicated region
    $region37: #{tpu_custom_call.1} parent=1 // pred_check
      _
    $region38: #{tpu_custom_call.1} parent=1 // pred_check_branch
      %298 = sbr.rel (0) target = $region40
    $region39: #{tpu_custom_call.1} parent=1 // pred_region
      %299 = dma.done [#allocation3], 256
    $region40: #{tpu_custom_call.1} parent=1 // pred_fallthru
      _
    // Predicated region
    $region41: #{tpu_custom_call.1} parent=1 // pred_check
      _
    $region42: #{tpu_custom_call.1} parent=1 // pred_check_branch
      %301 = sbr.rel (0) target = $region44
    $region43: #{tpu_custom_call.1} parent=1 // pred_region
      %302 = dma.done [#allocation5], 256
    $region44: #{tpu_custom_call.1} parent=1 // pred_fallthru
      _
    %303 = vsyncpa [#allocation3], 1
    %304 = vsyncpa [#allocation5], 1

</llo_original>
